<compile_context>
chip_gen: v5e
topology: v5e:2x2
jax: 0.10.0
libtpu: 0.0.40
codegen_flags: <defaults>
</compile_context>

<pallas_src>
import numpy as np
import jax
import jax.numpy as jnp
from jax import lax
from jax.experimental import pallas as pl
from jax.experimental.pallas import tpu as pltpu


def _make_center_loss_kernel(edges, num_bins, batch, tb, steps_per_core,
                             num_classes, feat_dim, needs_mask):
    """Fused binning + center-loss kernel.

    edges: tuple (per binned feature) of tuples of Python-float bin edges.
    """
    n_feat = len(num_bins)

    def kernel(feat_ref, tgt_ref, cent_ref, out_ref):
        c = pl.program_id(0)                  # parallel (megacore) axis
        i = pl.program_id(1)                  # arbitrary (reduction) axis
        bidx = c * steps_per_core + i         # logical batch-block index

        @pl.when(i == 0)
        def _init():
            out_ref[...] = jnp.zeros_like(out_ref)

        f = feat_ref[...].astype(jnp.float32)          # (tb, D)
        cent = cent_ref[...].astype(jnp.float32)       # (C, D)  resident
        t = tgt_ref[...].astype(jnp.float32)           # (n_feat, tb) lane-dense

        # ---- fused BinLoss.get_class: searchsorted(edges, v, left) == count(e < v)
        # edges = linspace(f_min, f_max, nb-1) includes both endpoints, so the
        # PyTorch min/max clamps are redundant for finite values.
        # NOTE: NaN targets bin to 0 here (torch.searchsorted puts them last).
        labels = jnp.zeros((1, tb), dtype=jnp.int32)
        for k in range(n_feat):
            v = t[k:k + 1, :]                          # (1, tb) lane-dense
            fb = jnp.zeros((1, tb), dtype=jnp.int32)
            for e in edges[k]:                         # <=3 Python-float consts
                fb = fb + (v > e).astype(jnp.int32)
            labels = labels * num_bins[k] + fb         # (1, tb) int32

        # ---- gather each row's center via one-hot MXU matmul (onehot.T @ C)
        class_iota = lax.broadcasted_iota(jnp.int32, (num_classes, 1), 0)
        onehot = (labels == class_iota).astype(jnp.float32)          # (C, tb)
        sel_c = lax.dot_general(onehot, cent,
                                (((0,), (0,)), ((), ())),
                                preferred_element_type=jnp.float32)  # (tb, D)

        diff = f - sel_c
        sq = diff * diff
        ones_d = jnp.ones((feat_dim, 1), jnp.float32)
        d2 = jnp.dot(sq, ones_d, preferred_element_type=jnp.float32)  # (tb, 1)
        d2 = jnp.clip(d2, 1e-12, 1e12)

        ones_row = jnp.ones((1, tb), jnp.float32)

        def _accum(vals):
            out_ref[...] += jnp.dot(ones_row, vals,
                                    preferred_element_type=jnp.float32
                                    ).reshape(out_ref.shape)

        if needs_mask:
            # Full tiles take the cheap path; only ragged / out-of-range block
            # slots pay for the iota + where (which zeroes garbage rows BEFORE
            # the sum, so stale/NaN padding cannot poison the accumulator).
            is_full = (bidx + 1) * tb <= batch

            @pl.when(is_full)
            def _full():
                _accum(d2)

            @pl.when(jnp.logical_not(is_full))
            def _ragged():
                row = bidx * tb + lax.broadcasted_iota(jnp.int32, (tb, 1), 0)
                _accum(jnp.where(row < batch, d2, 0.0))
        else:
            _accum(d2)

    return kernel


def bp_class_loss(features, target, centers, num_bins, ranges, *, block_b=4096):
    """Forward pass of BPClassLoss: CenterLoss(features, bin(target[:, 0:2]))."""
    batch, feat_dim = features.shape
    num_classes, cdim = centers.shape
    assert cdim == feat_dim
    n_feat = len(num_bins)
    assert target.shape[1] >= n_feat

    # Static bin edges (torch.linspace(f_min, f_max, num_bins[i]-1)), baked
    # into the kernel as Python-float constants.
    edges = tuple(
        tuple(np.linspace(ranges[i][0], ranges[i][1],
                          num_bins[i] - 1, dtype=np.float32).tolist())
        for i in range(n_feat)
    )

    # Only the used target columns, transposed so the batch lands on lanes
    # (lane-dense binning + contiguous DMA + ~40x smaller target tile).
    tgt_t = jnp.transpose(target[:, :n_feat])                    # (n_feat, B)

    # ---- batch tile: multiple of 128 (lane dim of the target tile), sized
    # from the PADDED VMEM shapes (double-buffered) to stay <= ~12 MiB --
    # under v5e's 16 MiB scoped default and far under v6e / v7x budgets.
    lane_pad = lambda n: ((n + 127) // 128) * 128
    sub_pad = lambda n: ((n + 7) // 8) * 8
    feat_row_bytes = lane_pad(feat_dim) * features.dtype.itemsize
    tgt_row_bytes = sub_pad(n_feat) * target.dtype.itemsize
    per_row = 2 * (feat_row_bytes + tgt_row_bytes)               # 2x: dbl-buffer
    budget = 12 * 1024 * 1024
    max_rows = max(128, (budget // per_row) // 128 * 128)

    if batch <= min(block_b, max_rows):
        tb = batch                       # block == full extent (always legal)
    else:
        tb = max(128, min((block_b // 128) * 128, max_rows))

    total_blocks = (batch + tb - 1) // tb
    # Split the batch across v7x's 2 TensorCores; harmless on 1-core chips.
    num_split = 2 if total_blocks >= 2 else 1
    steps_per_core = (total_blocks + num_split - 1) // num_split
    needs_mask = (num_split * steps_per_core * tb != batch)

    kernel = _make_center_loss_kernel(edges, tuple(num_bins), batch, tb,
                                      steps_per_core, num_classes, feat_dim,
                                      needs_mask)

    last_block = total_blocks - 1

    def _bmap(c, i):  # clamp so duplicated / out-of-range slots re-read valid data
        return jnp.minimum(c * steps_per_core + i, last_block)

    out = pl.pallas_call(
        kernel,
        out_shape=jax.ShapeDtypeStruct((num_split, 1, 1), jnp.float32),
        grid=(num_split, steps_per_core),
        in_specs=[
            pl.BlockSpec((tb, feat_dim), lambda c, i: (_bmap(c, i), 0)),       # features
            pl.BlockSpec((n_feat, tb), lambda c, i: (0, _bmap(c, i))),         # target.T
            pl.BlockSpec((num_classes, feat_dim), lambda c, i: (0, 0)),        # centers
        ],
        out_specs=pl.BlockSpec((1, 1, 1), lambda c, i: (c, 0, 0)),             # per-core acc
        compiler_params=pltpu.CompilerParams(
            dimension_semantics=("parallel", "arbitrary")),
    )(features, tgt_t, centers)

    # per-core partial sums -> mean (tiny XLA reduce in the wrapper)
    return jnp.sum(out) / batch


def _reference_loss(features, target, centers, num_bins, ranges):
    """Pure-JAX reference mirroring the PyTorch module (for sanity check)."""
    n_feat = len(num_bins)
    values = target[:, :n_feat]
    labels = jnp.zeros((values.shape[0],), dtype=jnp.int32)
    for i in range(n_feat):
        f_min, f_max = ranges[i]
        edges = jnp.asarray(
            np.linspace(f_min, f_max, num_bins[i] - 1, dtype=np.float32))
        fb = jnp.searchsorted(edges, values[:, i], side="left").astype(jnp.int32)
        fb = jnp.where(values[:, i] < f_min, 0, fb)
        fb = jnp.where(values[:, i] > f_max, num_bins[i] - 1, fb)
        labels = labels * num_bins[i] + fb
    sel = centers[labels]                                   # (B, D)
    d2 = jnp.sum((features - sel) ** 2, axis=-1)
    d2 = jnp.clip(d2, 1e-12, 1e12)
    return jnp.mean(d2)


if __name__ == "__main__":
    key = jax.random.PRNGKey(0)
    k1, k2, k3 = jax.random.split(key, 3)

    # module config: 2 binned target features, 4 bins each -> 16 classes
    num_bins = (4, 4)
    ranges = {0: (0.0, 1.0), 1: (0.0, 2.0)}
    feat_dim = 32
    num_classes = int(np.prod(num_bins))
    batch = 8

    # deterministic "parameters": centers ~ U[0,1) like torch.rand in __init__
    centers = jax.random.uniform(k1, (num_classes, feat_dim), dtype=jnp.float32)

    # example inputs (only target[:, 0:2] is used by the module)
    features = jax.random.normal(k2, (batch, feat_dim), dtype=jnp.float32)
    target = jax.random.uniform(k3, (batch, 3), dtype=jnp.float32) * 2.0

    loss = bp_class_loss(features, target, centers, num_bins, ranges)
    loss = jax.block_until_ready(loss)

    ref = jax.block_until_ready(
        _reference_loss(features, target, centers, num_bins, ranges))
    assert jnp.allclose(loss, ref, rtol=1e-4, atol=1e-5), (float(loss), float(ref))

    print("KERNEL_OK")
</pallas_src>

<mosaic_0001>
module attributes {stable_mosaic.version = 11 : i64} {
  func.func @kernel(%arg0: i32, %arg1: i32, %arg2: memref<8x32xf32, #tpu.memory_space<vmem>>, %arg3: memref<2x8xf32, #tpu.memory_space<vmem>>, %arg4: memref<16x32xf32, #tpu.memory_space<vmem>>, %arg5: memref<1x1x1xf32, #tpu.memory_space<vmem>>) attributes {dimension_semantics = [#tpu.dimension_semantics<parallel>, #tpu.dimension_semantics<arbitrary>], iteration_bounds = array<i64: 1, 1>, scalar_prefetch = 0 : i64, scratch_operands = 0 : i64, tpu.core_type = #tpu.core_type<tc>, window_params = [{transform_indices = @transform_0, window_bounds = array<i64: 8, 32>}, {transform_indices = @transform_1, window_bounds = array<i64: 2, 8>}, {pipeline_mode = #tpu.pipeline_mode<synchronous>, transform_indices = @transform_2, window_bounds = array<i64: 16, 32>}, {transform_indices = @transform_3, window_bounds = array<i64: 1, 1, 1>}]} {
    %c0_i32 = arith.constant 0 : i32
    %0 = arith.cmpi eq, %arg1, %c0_i32 : i32
    %1 = arith.extui %0 : i1 to i32
    %c0_i32_0 = arith.constant 0 : i32
    %2 = arith.cmpi ne, %1, %c0_i32_0 : i32
    scf.if %2 {
      %cst_28 = arith.constant 0.000000e+00 : f32
      %62 = vector.broadcast %cst_28 : f32 to vector<1x1x1xf32>
      %c0_29 = arith.constant 0 : index
      %c0_30 = arith.constant 0 : index
      %c0_31 = arith.constant 0 : index
      %63 = vector.load %arg5[%c0_29, %c0_30, %c0_31] : memref<1x1x1xf32, #tpu.memory_space<vmem>>, vector<1x1x1xf32>
      tpu.vector_store %arg5[%c0_29, %c0_30, %c0_31], %62 {strides = array<i32>} : memref<1x1x1xf32, #tpu.memory_space<vmem>>, vector<1x1x1xf32>,
    } else {
    }
    %c0 = arith.constant 0 : index
    %c0_1 = arith.constant 0 : index
    %3 = vector.load %arg2[%c0, %c0_1] : memref<8x32xf32, #tpu.memory_space<vmem>>, vector<8x32xf32>
    %c0_2 = arith.constant 0 : index
    %c0_3 = arith.constant 0 : index
    %4 = vector.load %arg4[%c0_2, %c0_3] : memref<16x32xf32, #tpu.memory_space<vmem>>, vector<16x32xf32>
    %c0_4 = arith.constant 0 : index
    %c0_5 = arith.constant 0 : index
    %5 = vector.load %arg3[%c0_4, %c0_5] : memref<2x8xf32, #tpu.memory_space<vmem>>, vector<2x8xf32>
    %c0_i32_6 = arith.constant 0 : i32
    %6 = vector.broadcast %c0_i32_6 : i32 to vector<1x8xi32>
    %7 = vector.extract_strided_slice %5 {offsets = [0, 0], sizes = [1, 8], strides = [1, 1]} : vector<2x8xf32> to vector<1x8xf32>
    %c0_i32_7 = arith.constant 0 : i32
    %8 = vector.broadcast %c0_i32_7 : i32 to vector<1x8xi32>
    %cst = arith.constant 0.000000e+00 : f32
    %9 = vector.broadcast %cst : f32 to vector<1x8xf32>
    %10 = arith.cmpf ogt, %7, %9 : vector<1x8xf32>
    %11 = arith.extui %10 : vector<1x8xi1> to vector<1x8xi32>
    %12 = arith.addi %8, %11 : vector<1x8xi32>
    %cst_8 = arith.constant 5.000000e-01 : f32
    %13 = vector.broadcast %cst_8 : f32 to vector<1x8xf32>
    %14 = arith.cmpf ogt, %7, %13 : vector<1x8xf32>
    %15 = arith.extui %14 : vector<1x8xi1> to vector<1x8xi32>
    %16 = arith.addi %12, %15 : vector<1x8xi32>
    %cst_9 = arith.constant 1.000000e+00 : f32
    %17 = vector.broadcast %cst_9 : f32 to vector<1x8xf32>
    %18 = arith.cmpf ogt, %7, %17 : vector<1x8xf32>
    %19 = arith.extui %18 : vector<1x8xi1> to vector<1x8xi32>
    %20 = arith.addi %16, %19 : vector<1x8xi32>
    %c4_i32 = arith.constant 4 : i32
    %21 = vector.broadcast %c4_i32 : i32 to vector<1x8xi32>
    %22 = arith.muli %6, %21 : vector<1x8xi32>
    %23 = arith.addi %22, %20 : vector<1x8xi32>
    %24 = vector.extract_strided_slice %5 {offsets = [1, 0], sizes = [1, 8], strides = [1, 1]} : vector<2x8xf32> to vector<1x8xf32>
    %c0_i32_10 = arith.constant 0 : i32
    %25 = vector.broadcast %c0_i32_10 : i32 to vector<1x8xi32>
    %cst_11 = arith.constant 0.000000e+00 : f32
    %26 = vector.broadcast %cst_11 : f32 to vector<1x8xf32>
    %27 = arith.cmpf ogt, %24, %26 : vector<1x8xf32>
    %28 = arith.extui %27 : vector<1x8xi1> to vector<1x8xi32>
    %29 = arith.addi %25, %28 : vector<1x8xi32>
    %cst_12 = arith.constant 1.000000e+00 : f32
    %30 = vector.broadcast %cst_12 : f32 to vector<1x8xf32>
    %31 = arith.cmpf ogt, %24, %30 : vector<1x8xf32>
    %32 = arith.extui %31 : vector<1x8xi1> to vector<1x8xi32>
    %33 = arith.addi %29, %32 : vector<1x8xi32>
    %cst_13 = arith.constant 2.000000e+00 : f32
    %34 = vector.broadcast %cst_13 : f32 to vector<1x8xf32>
    %35 = arith.cmpf ogt, %24, %34 : vector<1x8xf32>
    %36 = arith.extui %35 : vector<1x8xi1> to vector<1x8xi32>
    %37 = arith.addi %33, %36 : vector<1x8xi32>
    %c4_i32_14 = arith.constant 4 : i32
    %38 = vector.broadcast %c4_i32_14 : i32 to vector<1x8xi32>
    %39 = arith.muli %23, %38 : vector<1x8xi32>
    %40 = arith.addi %39, %37 : vector<1x8xi32>
    %41 = tpu.iota {dimensions = array<i32: 0>} : vector<16x1xi32>
    %42 = vector.broadcast %40 : vector<1x8xi32> to vector<16x8xi32>
    %43 = vector.broadcast %41 : vector<16x1xi32> to vector<16x8xi32>
    %44 = arith.cmpi eq, %42, %43 : vector<16x8xi32>
    %45 = arith.extui %44 : vector<16x8xi1> to vector<16x8xi32>
    %46 = arith.sitofp %45 : vector<16x8xi32> to vector<16x8xf32>
    %cst_15 = arith.constant dense<0.000000e+00> : vector<8x32xf32>
    %47 = tpu.matmul %46, %4, %cst_15 {dimension_numbers = #tpu.dot_dimension_numbers<[0], [0], [1], [1], [0, 1, 1, 1], [], []>} : vector<16x8xf32>, vector<16x32xf32>, vector<8x32xf32> -> vector<8x32xf32>
    %48 = arith.subf %3, %47 : vector<8x32xf32>
    %49 = arith.mulf %48, %48 : vector<8x32xf32>
    %cst_16 = arith.constant 1.000000e+00 : f32
    %50 = vector.broadcast %cst_16 : f32 to vector<32x1xf32>
    %cst_17 = arith.constant dense<0.000000e+00> : vector<8x1xf32>
    %51 = tpu.matmul %49, %50, %cst_17 {dimension_numbers = #tpu.dot_dimension_numbers<[1], [0], [0], [1], [0, 0, 1, 1], [], []>} : vector<8x32xf32>, vector<32x1xf32>, vector<8x1xf32> -> vector<8x1xf32>
    %cst_18 = arith.constant 9.99999996E-13 : f32
    %cst_19 = arith.constant 9.99999995E+11 : f32
    %52 = vector.broadcast %cst_18 : f32 to vector<8x1xf32>
    %53 = arith.maximumf %52, %51 : vector<8x1xf32>
    %54 = vector.broadcast %cst_19 : f32 to vector<8x1xf32>
    %55 = arith.minimumf %54, %53 : vector<8x1xf32>
    %cst_20 = arith.constant 1.000000e+00 : f32
    %56 = vector.broadcast %cst_20 : f32 to vector<1x8xf32>
    %c0_21 = arith.constant 0 : index
    %c0_22 = arith.constant 0 : index
    %c0_23 = arith.constant 0 : index
    %57 = vector.load %arg5[%c0_21, %c0_22, %c0_23] : memref<1x1x1xf32, #tpu.memory_space<vmem>>, vector<1x1x1xf32>
    %cst_24 = arith.constant dense<0.000000e+00> : vector<1x1xf32>
    %58 = tpu.matmul %56, %55, %cst_24 {dimension_numbers = #tpu.dot_dimension_numbers<[1], [0], [0], [1], [0, 0, 1, 1], [], []>} : vector<1x8xf32>, vector<8x1xf32>, vector<1x1xf32> -> vector<1x1xf32>
    %59 = vector.shape_cast %58 : vector<1x1xf32> to vector<1x1x1xf32>
    %60 = arith.addf %57, %59 : vector<1x1x1xf32>
    %c0_25 = arith.constant 0 : index
    %c0_26 = arith.constant 0 : index
    %c0_27 = arith.constant 0 : index
    %61 = vector.load %arg5[%c0_25, %c0_26, %c0_27] : memref<1x1x1xf32, #tpu.memory_space<vmem>>, vector<1x1x1xf32>
    tpu.vector_store %arg5[%c0_25, %c0_26, %c0_27], %60 {strides = array<i32>} : memref<1x1x1xf32, #tpu.memory_space<vmem>>, vector<1x1x1xf32>,
    return
  }
  func.func @transform_0(%arg0: i32, %arg1: i32) -> (i32, i32) {
    %c1_i32 = arith.constant 1 : i32
    %0 = arith.muli %arg0, %c1_i32 : i32
    %1 = arith.addi %0, %arg1 : i32
    %c0_i32 = arith.constant 0 : i32
    %2 = arith.minsi %1, %c0_i32 : i32
    %c0_i32_0 = arith.constant 0 : i32
    %c0_i32_1 = arith.constant 0 : i32
    return %2, %c0_i32_0 : i32, i32
  }
  func.func @transform_1(%arg0: i32, %arg1: i32) -> (i32, i32) {
    %c1_i32 = arith.constant 1 : i32
    %0 = arith.muli %arg0, %c1_i32 : i32
    %1 = arith.addi %0, %arg1 : i32
    %c0_i32 = arith.constant 0 : i32
    %2 = arith.minsi %1, %c0_i32 : i32
    %c0_i32_0 = arith.constant 0 : i32
    %c0_i32_1 = arith.constant 0 : i32
    return %c0_i32_0, %2 : i32, i32
  }
  func.func @transform_2(%arg0: i32, %arg1: i32) -> (i32, i32) {
    %c0_i32 = arith.constant 0 : i32
    %c0_i32_0 = arith.constant 0 : i32
    %c0_i32_1 = arith.constant 0 : i32
    return %c0_i32, %c0_i32_0 : i32, i32
  }
  func.func @transform_3(%arg0: i32, %arg1: i32) -> (i32, i32, i32) {
    %c0_i32 = arith.constant 0 : i32
    %c0_i32_0 = arith.constant 0 : i32
    %c0_i32_1 = arith.constant 0 : i32
    return %arg0, %c0_i32, %c0_i32_0 : i32, i32, i32
  }
}

</mosaic_0001>

<llo_original>
// kernel: tpu_custom_call.1
$region0: #{tpu_custom_call.1}
  #allocation0 [shape = 'u32[]', space=smem, size = 0x4, offset = 0x4, fixed_abs, tag = 'smem constant byte address 0x4 - core index']
  #allocation1 [shape = 'u32[72,128]{1,0:T(1,128)}', space=vmem, size = 0x9000, scoped, tag = 'internal scratch']
  %s0 = inlined_call_operand.hbm [shape: f32[8,32], index: 0, kind: input, shape index: {}]
  %s1 = inlined_call_operand.hbm [shape: f32[2,8], index: 1, kind: input, shape index: {}]
  %s2 = inlined_call_operand.hbm [shape: f32[16,32], index: 2, kind: input, shape index: {}]
  %s3 = inlined_call_operand.hbm [shape: f32[1,1,1], index: 3, kind: output, shape index: {}]
  %s4 = sld [smem:[#allocation0]]
  $region38: #{tpu_custom_call.1} parent=0
    _
  %s6 = ssub.s32 1, %s4
  %s7 = scalar_select 0, %s6, %s4
  $region1: #{tpu_custom_call.1} parent=0
    #allocation2 [shape = 'u8[4096]{0}', space=vmem, size = 0x1000, scoped, tag = 'input window, operand 0, single buffered']
    #allocation3 [shape = 's32[1]{0}', space=sflag, size = 0x4, scoped, tag = 'scoped memory for tpu_custom_call.1']
    #allocation4 [shape = 's32[1]{0}', space=sflag, size = 0x4, scoped, tag = 'scoped memory for tpu_custom_call.1']
    #allocation5 [shape = 'u8[1024]{0}', space=vmem, size = 0x400, scoped, tag = 'input window, operand 1, single buffered']
    #allocation6 [shape = 's32[1]{0}', space=sflag, size = 0x4, scoped, tag = 'scoped memory for tpu_custom_call.1']
    #allocation7 [shape = 'u8[8192]{0}', space=vmem, size = 0x2000, scoped, tag = 'input window, operand 2, single buffered']
    #allocation8 [shape = 'u8[512]{0}', space=vmem, size = 0x400, scoped, tag = 'output window, operand 0, single buffered']
    %8 = vsyncpa [#allocation3], 0
    %9 = vsyncpa [#allocation6], 0
    %10 = vsyncpa [#allocation4], 0
    // Predicated region
    $region2: #{tpu_custom_call.1} parent=1 // pred_check
      _
    $region3: #{tpu_custom_call.1} parent=1 // pred_check_branch
      %12 = sbr.rel (0) target = $region5
    $region4: #{tpu_custom_call.1} parent=1 // pred_region
      %s13 = sadd.s32 0, 0
      %p14 = scmp.lt.s32.totalorder %s13, 0
      %s15 = scalar_select %p14, %s13, 0
      %17 = vsyncadd [#allocation3], 0
      %s18 = smul.addr %s15, 8
      %s19 = scalar_lea.hbm %s0, %s18
      %s21 = sshll.u32 %s19, 4
      %s22 = int_to_ptr.hbm [resolvable:$true] %s21
      %s23 = sshll.u32 [#allocation2], 4
      %s24 = int_to_ptr.vmem [resolvable:$true] %s23
      %26 = dma.hbm_to_vmem [thread:$0]  %s22, 128, %s24, [#allocation3]
    $region5: #{tpu_custom_call.1} parent=1 // pred_fallthru
      _
    // Predicated region
    $region6: #{tpu_custom_call.1} parent=1 // pred_check
      _
    $region7: #{tpu_custom_call.1} parent=1 // pred_check_branch
      %28 = sbr.rel (0) target = $region9
    $region8: #{tpu_custom_call.1} parent=1 // pred_region
      %s29 = sadd.s32 0, 0
      %p30 = scmp.lt.s32.totalorder %s29, 0
      %s31 = scalar_select %p30, %s29, 0
      %33 = vsyncadd [#allocation6], 0
      %s34 = smul.addr %s31, 2
      %s35 = scalar_lea.hbm %s1, %s34
      %s37 = sshll.u32 %s35, 4
      %s38 = int_to_ptr.hbm [resolvable:$true] %s37
      %s39 = sshll.u32 [#allocation5], 4
      %s40 = int_to_ptr.vmem [resolvable:$true] %s39
      %42 = dma.hbm_to_vmem [thread:$0]  %s38, 32, %s40, [#allocation6]
    $region9: #{tpu_custom_call.1} parent=1 // pred_fallthru
      _
    // Predicated region
    $region10: #{tpu_custom_call.1} parent=1 // pred_check
      _
    $region11: #{tpu_custom_call.1} parent=1 // pred_check_branch
      %44 = sbr.rel (0) target = $region13
    $region12: #{tpu_custom_call.1} parent=1 // pred_region
      %46 = vsyncadd [#allocation6], 0
      %s47 = sshll.u32 %s2, 4
      %s48 = int_to_ptr.hbm [resolvable:$true] %s47
      %s49 = sshll.u32 [#allocation7], 4
      %s50 = int_to_ptr.vmem [resolvable:$true] %s49
      %55 = dma.hbm_to_vmem [thread:$0]  %s48, 256, %s50, [#allocation6], 128, 128, 8
    $region13: #{tpu_custom_call.1} parent=1 // pred_fallthru
      _
    // Predicated region
    $region14: #{tpu_custom_call.1} parent=1 // pred_check
      _
    $region15: #{tpu_custom_call.1} parent=1 // pred_check_branch
      %57 = sbr.rel (0) target = $region17
    $region16: #{tpu_custom_call.1} parent=1 // pred_region
      %59 = dma.done [#allocation3], 128
    $region17: #{tpu_custom_call.1} parent=1 // pred_fallthru
      _
    // Predicated region
    $region18: #{tpu_custom_call.1} parent=1 // pred_check
      _
    $region19: #{tpu_custom_call.1} parent=1 // pred_check_branch
      %61 = sbr.rel (0) target = $region21
    $region20: #{tpu_custom_call.1} parent=1 // pred_region
      %63 = dma.done [#allocation6], 32
    $region21: #{tpu_custom_call.1} parent=1 // pred_fallthru
      _
    // Predicated region
    $region22: #{tpu_custom_call.1} parent=1 // pred_check
      _
    $region23: #{tpu_custom_call.1} parent=1 // pred_check_branch
      %65 = sbr.rel (0) target = $region25
    $region24: #{tpu_custom_call.1} parent=1 // pred_region
      %67 = dma.done [#allocation6], 256
    $region25: #{tpu_custom_call.1} parent=1 // pred_fallthru
      _
    %s68 = sadd.s32 0, 0
    %p69 = scmp.lt.s32.totalorder %s68, 0
    %s70 = scalar_select %p69, %s68, 0
    %s71 = sadd.s32 0, 0
    %p72 = scmp.lt.s32.totalorder %s71, 0
    %s73 = scalar_select %p72, %s71, 0
    %p74 = scmp.eq.s32.totalorder 0, 0
    // Predicated region
    $region26: #{tpu_custom_call.1} parent=1 // pred_check
      %p75 = pneg %p74
    $region27: #{tpu_custom_call.1} parent=1 // pred_check_branch
      %77 = sbr.rel (%p75) target = $region29
    $region28: #{tpu_custom_call.1} parent=1 // pred_region
      %vm78 = vcmask 0
      %79 = vst.msk [vmem:[#allocation8] sm:$0x1] %vm78, 0.0
    $region29: #{tpu_custom_call.1} parent=1 // pred_fallthru
      _
    %v80 = vld [vmem:[#allocation2] sm:$0xff]
    %v81 = vld [vmem:[#allocation7] sm:$0xff]
    %v82 = vld [vmem:[#allocation7 + $0x8] sm:$0xff]
    %v83 = vld [vmem:[#allocation5] sm:$0x3]
    %vm84 = vcmp.gt.f32.partialorder %v83, 0.0
    %v85 = vsel %vm84, 1, 0
    %vm86 = vcmp.gt.f32.partialorder %v83, 0.5
    %v87 = vsel %vm86, 1, 0
    %v88 = vadd.s32 %v85, %v87
    %vm89 = vcmp.gt.f32.partialorder %v83, 1.0
    %v90 = vsel %vm89, 1, 0
    %v91 = vadd.s32 %v88, %v90
    %v92 = vadd.s32 %v85, %v90
    %vm93 = vcmp.gt.f32.partialorder %v83, 2.0
    %v94 = vsel %vm93, 1, 0
    %v95 = vadd.s32 %v92, %v94
    %v96 = vmul.u32 %v91, 4
    %v97 = vrot.slane %v95, 1
    %v98 = vadd.s32 %v96, %v97
    %v99 = vlaneseq
    %v100 = vshrl.u32 %v99, 7
    %v101 = vadd.s32 %v100, 8
    %v102 = vperm.slane %v98, 0
    %vm103 = vcmp.eq.s32.totalorder %v102, %v100
    %vm104 = vcmp.eq.s32.totalorder %v102, %v101
    %v105 = vsel %vm103, 1, 0
    %v106 = vsel %vm104, 1, 0
    %v107 = vcvt.s32.f32 %v105
    %v108 = vcvt.s32.f32 %v106
    %109 = vxpose.xlu0.b32.start [1/16] %v107, 128
    %110 = vxpose.xlu0.b32.cont [2/16] %v108, 128
    %111 = vxpose.xlu0.b32.cont [3/16] 0.0, 128
    %112 = vxpose.xlu0.b32.cont [4/16] 0.0, 128
    %113 = vxpose.xlu0.b32.cont [5/16] 0.0, 128
    %114 = vxpose.xlu0.b32.cont [6/16] 0.0, 128
    %115 = vxpose.xlu0.b32.cont [7/16] 0.0, 128
    %116 = vxpose.xlu0.b32.cont [8/16] 0.0, 128
    %117 = vxpose.xlu0.b32.cont [9/16] 0.0, 128
    %118 = vxpose.xlu0.b32.cont [10/16] 0.0, 128
    %119 = vxpose.xlu0.b32.cont [11/16] 0.0, 128
    %120 = vxpose.xlu0.b32.cont [12/16] 0.0, 128
    %121 = vxpose.xlu0.b32.cont [13/16] 0.0, 128
    %122 = vxpose.xlu0.b32.cont [14/16] 0.0, 128
    %123 = vxpose.xlu0.b32.cont [15/16] 0.0, 128
    %124 = vxpose.xlu0.b32.end [16/16] 0.0, 128
    %v125 = vpop.trf.xlu0
    %v126 = vpop.trf.xlu0
    %v127 = vpop.trf.xlu0
    %v128 = vpop.trf.xlu0
    %v129 = vpop.trf.xlu0
    %v130 = vpop.trf.xlu0
    %v131 = vpop.trf.xlu0
    %v132 = vpop.trf.xlu0
    %v133 = vpop.trf.xlu0
    %v134 = vpop.trf.xlu0
    %v135 = vpop.trf.xlu0
    %v136 = vpop.trf.xlu0
    %v137 = vpop.trf.xlu0
    %v138 = vpop.trf.xlu0
    %v139 = vpop.trf.xlu0
    %v140 = vpop.trf.xlu0
    %vm141 = vcmask 130048
    %v143 = vsel %vm141, %v125, 0
    %145 = vmatpush.msra.mxu0 0.0
    %146 = vmatpush.msra.mxu0 0.0
    %147 = vmatpush.msra.mxu0 0.0
    %148 = vmatpush.msra.mxu0 0.0
    %149 = vmatpush.msra.mxu0 0.0
    %150 = vmatpush.msra.mxu0 0.0
    %151 = vmatpush.msra.mxu0 0.0
    %152 = vmatpush.msra.mxu0 0.0
    %153 = vmatpush.msra.mxu0 0.0
    %154 = vmatpush.msra.mxu0 0.0
    %155 = vmatpush.msra.mxu0 0.0
    %156 = vmatpush.msra.mxu0 0.0
    %157 = vmatpush.msra.mxu0 0.0
    %158 = vmatpush.msra.mxu0 0.0
    %159 = vmatpush.msra.mxu0 %v82
    %160 = vmatpush.msra.mxu0 %v81
    %161 = vmatmul.f32.gmra.mxu0 %v143
    %v162 = vpop.f32.mrf.mxu0
    %v163 = vadd.f32 0.0, %v162
    %164 = vdwg.mxu0
    %v165 = vsub.f32 %v80, %v163
    %v166 = vmul.f32 %v165, %v165
    %vm167 = vcmask 261120
    %v169 = vsel %vm167, %v166, 0
    %171 = vmatpush.msra.mxu0 0.0
    %172 = vmatpush.msra.mxu0 0.0
    %173 = vmatpush.msra.mxu0 0.0
    %174 = vmatpush.msra.mxu0 0.0
    %175 = vmatpush.msra.mxu0 0.0
    %176 = vmatpush.msra.mxu0 0.0
    %177 = vmatpush.msra.mxu0 0.0
    %178 = vmatpush.msra.mxu0 0.0
    %179 = vmatpush.msra.mxu0 0.0
    %180 = vmatpush.msra.mxu0 0.0
    %181 = vmatpush.msra.mxu0 0.0
    %182 = vmatpush.msra.mxu0 0.0
    %183 = vmatpush.msra.mxu0 1.0
    %184 = vmatpush.msra.mxu0 1.0
    %185 = vmatpush.msra.mxu0 1.0
    %186 = vmatpush.msra.mxu0 1.0
    %187 = vmatmul.f32.gmra.mxu0 %v169
    %v188 = vpop.f32.mrf.mxu0
    %v189 = vadd.f32 0.0, %v188
    %190 = vdwg.mxu0
    %v191 = vmax.f32 %v189, 1e-12
    %v192 = vmin.f32 %v191, 1e+12
    %v193 = vld [vmem:[#allocation8] sm:$0x1]
    %vm194 = vcmask 64512
    %v196 = vsel %vm194, 1.0, 0
    %198 = vmatpush.msra.mxu0 0.0
    %199 = vmatpush.msra.mxu0 0.0
    %200 = vmatpush.msra.mxu0 0.0
    %201 = vmatpush.msra.mxu0 0.0
    %202 = vmatpush.msra.mxu0 0.0
    %203 = vmatpush.msra.mxu0 0.0
    %204 = vmatpush.msra.mxu0 0.0
    %205 = vmatpush.msra.mxu0 0.0
    %206 = vmatpush.msra.mxu0 0.0
    %207 = vmatpush.msra.mxu0 0.0
    %208 = vmatpush.msra.mxu0 0.0
    %209 = vmatpush.msra.mxu0 0.0
    %210 = vmatpush.msra.mxu0 0.0
    %211 = vmatpush.msra.mxu0 0.0
    %212 = vmatpush.msra.mxu0 0.0
    %213 = vmatpush.msra.mxu0 %v192
    %214 = vmatmul.f32.gmra.mxu0 %v196
    %v215 = vpop.f32.mrf.mxu0
    %v216 = vadd.f32 0.0, %v215
    %217 = vdwg.mxu0
    %v218 = vadd.f32 %v193, %v216
    %vm219 = vcmask 0
    %220 = vst.msk [vmem:[#allocation8] sm:$0x1] %vm219, %v218
    // Predicated region
    $region30: #{tpu_custom_call.1} parent=1 // pred_check
      _
    $region31: #{tpu_custom_call.1} parent=1 // pred_check_branch
      %222 = sbr.rel (0) target = $region33
    $region32: #{tpu_custom_call.1} parent=1 // pred_region
      %224 = vsyncadd [#allocation4], 0
      %s226 = sshll.u32 [#allocation8], 4
      %s227 = int_to_ptr.vmem [resolvable:$true] %s226
      %s228 = sshll.u32 %s3, 4
      %s229 = int_to_ptr.hbm [resolvable:$true] %s228
      %231 = dma.vmem_to_hbm [thread:$0]  %s227, 16, %s229, [#allocation4]
    $region33: #{tpu_custom_call.1} parent=1 // pred_fallthru
      _
    // Predicated region
    $region34: #{tpu_custom_call.1} parent=1 // pred_check
      _
    $region35: #{tpu_custom_call.1} parent=1 // pred_check_branch
      %233 = sbr.rel (0) target = $region37
    $region36: #{tpu_custom_call.1} parent=1 // pred_region
      %235 = dma.done [#allocation4], 16
    $region37: #{tpu_custom_call.1} parent=1 // pred_fallthru
      _
    %236 = vsyncpa [#allocation3], 1
    %237 = vsyncpa [#allocation6], 1
    %238 = vsyncpa [#allocation4], 1

</llo_original>
